<compile_context>
chip_gen: v7x
topology: tpu7x:2x2x1
jax: 0.10.0
libtpu: 0.0.40
codegen_flags: <defaults>
</compile_context>

<pallas_src>
import functools

import jax
import jax.numpy as jnp
from jax.experimental import pallas as pl
from jax.experimental.pallas import tpu as pltpu


_VMEM_TILE_BUDGET = 24 * 1024 * 1024   # bytes of double-buffered tiles we aim for
_VMEM_LIMIT = 32 * 1024 * 1024         # scoped-VMEM limit: safe on v5e/v6e/v7x


def _pick_block_rows(rows, row_bytes_per_stream, n_streams, budget=_VMEM_TILE_BUDGET):
    """Largest row tile that (a) divides `rows` (or equals it), (b) is a multiple of 8,
    and (c) keeps `n_streams` double-buffered tiles under the VMEM budget."""
    per_row = 2 * n_streams * max(row_bytes_per_stream, 1)
    target = max(8, budget // per_row)
    target = min(target, rows, 4096)
    if target >= rows:
        return rows
    target = max(8, (target // 8) * 8)
    while target > 8 and rows % target != 0:
        target -= 8
    return target if rows % target == 0 else rows


# ----------------------------- shared LN math (torch semantics) -----------------------------
def _ln_affine(x_f32, a_ref, b_ref, eps):
    h = x_f32.shape[-1]
    mean = jnp.mean(x_f32, axis=-1, keepdims=True)
    xc = x_f32 - mean
    # torch.Tensor.std() is unbiased: divide by (H - 1); eps is added to std (not var).
    var = jnp.sum(xc * xc, axis=-1, keepdims=True) * jnp.float32(1.0 / (h - 1))
    inv = 1.0 / (jnp.sqrt(var) + jnp.float32(eps))
    return a_ref[...].astype(jnp.float32) * (xc * inv) + b_ref[...].astype(jnp.float32)


# ---------------------------------- Kernel A: LayerNorm -------------------------------------
def _layernorm_kernel(x_ref, a_ref, b_ref, o_ref, *, eps):
    x = x_ref[...].astype(jnp.float32)                 # (block_rows, H)
    o_ref[...] = _ln_affine(x, a_ref, b_ref, eps).astype(o_ref.dtype)


def layernorm_pallas(x2d, a_2, b_2, *, eps=1e-6):
    rows, hidden = x2d.shape
    itemsize = x2d.dtype.itemsize
    block_rows = _pick_block_rows(rows, hidden * itemsize, n_streams=2)  # x in + out
    grid = (rows // block_rows,)
    a2d = a_2.reshape(1, hidden)
    b2d = b_2.reshape(1, hidden)
    row_spec = pl.BlockSpec((block_rows, hidden), lambda i: (i, 0))
    vec_spec = pl.BlockSpec((1, hidden), lambda i: (0, 0))
    return pl.pallas_call(
        functools.partial(_layernorm_kernel, eps=eps),
        out_shape=jax.ShapeDtypeStruct((rows, hidden), x2d.dtype),
        grid=grid,
        in_specs=[row_spec, vec_spec, vec_spec],
        out_specs=row_spec,
        compiler_params=pltpu.CompilerParams(
            dimension_semantics=("parallel",), vmem_limit_bytes=_VMEM_LIMIT),
    )(x2d, a2d, b2d)


# --------------------------- Kernel B: residual + inverted dropout ---------------------------
def _residual_dropout_kernel(x_ref, y_ref, bits_ref, o_ref, *, threshold, scale):
    keep = bits_ref[...] >= jnp.uint32(threshold)      # P(keep) = 1 - rate
    y = jnp.where(keep, y_ref[...].astype(jnp.float32) * jnp.float32(scale),
                  jnp.float32(0.0))
    o_ref[...] = (x_ref[...].astype(jnp.float32) + y).astype(o_ref.dtype)


def _residual_kernel(x_ref, y_ref, o_ref):
    o_ref[...] = x_ref[...] + y_ref[...]


def residual_dropout_pallas(x2d, y2d, *, rate, training, key=None):
    rows, hidden = x2d.shape
    apply_dropout = bool(training) and rate > 0.0
    total = rows * hidden
    # Present a lane-dense (..., 128) view to this purely-elementwise kernel so a small
    # hidden size (e.g. 32) does not force masked partial stores.
    if total % 128 == 0:
        v_rows, lanes = total // 128, 128
    else:
        v_rows, lanes = rows, hidden
    xv = x2d.reshape(v_rows, lanes)
    yv = y2d.reshape(v_rows, lanes)

    itemsize = x2d.dtype.itemsize
    n_streams = 4 if apply_dropout else 3              # x, y, (bits), out
    block_rows = _pick_block_rows(v_rows, lanes * itemsize, n_streams)
    grid = (v_rows // block_rows,)
    tile = pl.BlockSpec((block_rows, lanes), lambda i: (i, 0))
    cparams = pltpu.CompilerParams(
        dimension_semantics=("parallel",), vmem_limit_bytes=_VMEM_LIMIT)
    out_shape = jax.ShapeDtypeStruct((v_rows, lanes), x2d.dtype)

    if apply_dropout:
        assert key is not None, "training dropout needs a PRNG key"
        bits = jax.random.bits(key, (v_rows, lanes), dtype=jnp.uint32)
        threshold = min(int(rate * (1 << 32)), (1 << 32) - 1)
        scale = 1.0 / (1.0 - rate)
        out = pl.pallas_call(
            functools.partial(_residual_dropout_kernel,
                              threshold=threshold, scale=scale),
            out_shape=out_shape, grid=grid,
            in_specs=[tile, tile, tile], out_specs=tile,
            compiler_params=cparams,
        )(xv, yv, bits)
    else:
        out = pl.pallas_call(
            _residual_kernel,
            out_shape=out_shape, grid=grid,
            in_specs=[tile, tile], out_specs=tile,
            compiler_params=cparams,
        )(xv, yv)
    return out.reshape(rows, hidden)


# ----------------- Kernel C: fused LN + Linear + bias (+ dropout) + residual -----------------
def _fused_ln_linear_res_kernel(x_ref, w_ref, bias_ref, a_ref, b_ref, o_ref, *, eps):
    x = x_ref[...].astype(jnp.float32)
    normed = _ln_affine(x, a_ref, b_ref, eps)
    y = jnp.dot(normed.astype(w_ref.dtype), w_ref[...],
                preferred_element_type=jnp.float32) + bias_ref[...].astype(jnp.float32)
    o_ref[...] = (x + y).astype(o_ref.dtype)


def _fused_ln_linear_drop_res_kernel(x_ref, w_ref, bias_ref, a_ref, b_ref, bits_ref,
                                     o_ref, *, eps, threshold, scale):
    x = x_ref[...].astype(jnp.float32)
    normed = _ln_affine(x, a_ref, b_ref, eps)
    y = jnp.dot(normed.astype(w_ref.dtype), w_ref[...],
                preferred_element_type=jnp.float32) + bias_ref[...].astype(jnp.float32)
    keep = bits_ref[...] >= jnp.uint32(threshold)
    y = jnp.where(keep, y * jnp.float32(scale), jnp.float32(0.0))
    o_ref[...] = (x + y).astype(o_ref.dtype)


def fused_sublayer_linear_pallas(x2d, a_2, b_2, w, bias, *, eps, rate, training,
                                 key=None):
    rows, hidden = x2d.shape
    assert w.shape == (hidden, hidden)
    apply_dropout = bool(training) and rate > 0.0
    itemsize = x2d.dtype.itemsize
    w_bytes = hidden * hidden * w.dtype.itemsize
    # Weight/bias/scale/shift blocks have a constant index_map -> kept resident.
    budget = max(_VMEM_TILE_BUDGET - 2 * w_bytes, 2 * 1024 * 1024)
    n_streams = 3 if apply_dropout else 2               # x, (bits), out tiled by rows
    block_rows = _pick_block_rows(rows, hidden * itemsize, n_streams, budget)
    grid = (rows // block_rows,)

    a2d = a_2.reshape(1, hidden)
    b2d = b_2.reshape(1, hidden)
    bias2d = bias.reshape(1, hidden)

    row_spec = pl.BlockSpec((block_rows, hidden), lambda i: (i, 0))
    w_spec = pl.BlockSpec((hidden, hidden), lambda i: (0, 0))
    vec_spec = pl.BlockSpec((1, hidden), lambda i: (0, 0))
    cparams = pltpu.CompilerParams(
        dimension_semantics=("parallel",), vmem_limit_bytes=_VMEM_LIMIT)
    out_shape = jax.ShapeDtypeStruct((rows, hidden), x2d.dtype)

    if apply_dropout:
        assert key is not None, "training dropout needs a PRNG key"
        bits = jax.random.bits(key, (rows, hidden), dtype=jnp.uint32)
        threshold = min(int(rate * (1 << 32)), (1 << 32) - 1)
        scale = 1.0 / (1.0 - rate)
        return pl.pallas_call(
            functools.partial(_fused_ln_linear_drop_res_kernel, eps=eps,
                              threshold=threshold, scale=scale),
            out_shape=out_shape, grid=grid,
            in_specs=[row_spec, w_spec, vec_spec, vec_spec, vec_spec, row_spec],
            out_specs=row_spec, compiler_params=cparams,
        )(x2d, w, bias2d, a2d, b2d, bits)
    return pl.pallas_call(
        functools.partial(_fused_ln_linear_res_kernel, eps=eps),
        out_shape=out_shape, grid=grid,
        in_specs=[row_spec, w_spec, vec_spec, vec_spec, vec_spec],
        out_specs=row_spec, compiler_params=cparams,
    )(x2d, w, bias2d, a2d, b2d)


# ------------------------------------- Module wrappers ---------------------------------------
def sublayer_connection_forward(x, a_2, b_2, sublayer_fn, *, dropout_rate, training,
                                key=None, eps=1e-6):
    """Generic path: LN kernel -> arbitrary JAX `sublayer_fn` -> residual+dropout kernel."""
    B, S, H = x.shape
    x2d = x.reshape(B * S, H)
    normed = layernorm_pallas(x2d, a_2, b_2, eps=eps).reshape(B, S, H)
    sub = sublayer_fn(normed).reshape(B * S, H)
    out = residual_dropout_pallas(x2d, sub, rate=dropout_rate, training=training, key=key)
    return out.reshape(B, S, H)


def sublayer_connection_linear_forward(x, a_2, b_2, w, bias, *, dropout_rate, training,
                                       key=None, eps=1e-6):
    """Fused fast path when the sublayer is Linear(H, H): a single pallas_call."""
    B, S, H = x.shape
    x2d = x.reshape(B * S, H)
    out = fused_sublayer_linear_pallas(x2d, a_2, b_2, w, bias, eps=eps,
                                       rate=dropout_rate, training=training, key=key)
    return out.reshape(B, S, H)


# ----------------------------------------- Demo / test ---------------------------------------
if __name__ == "__main__":
    B, S, H = 2, 8, 32
    key = jax.random.PRNGKey(0)
    kx, kw, kb, kdrop = jax.random.split(key, 4)

    x = jax.random.normal(kx, (B, S, H), dtype=jnp.float32)

    # SublayerConnection(size=H, dropout=0.1) parameter init
    a_2 = jnp.ones((H,), dtype=jnp.float32)
    b_2 = jnp.zeros((H,), dtype=jnp.float32)
    dropout_rate = 0.1

    # Deterministic example sublayer: a Linear(H, H)
    w = jax.random.normal(kw, (H, H), dtype=jnp.float32) * 0.05
    bias = jax.random.normal(kb, (H,), dtype=jnp.float32) * 0.05
    sublayer_fn = lambda t: t @ w + bias

    # Pure-JAX reference (torch semantics: unbiased std, eps added to std)
    mean = jnp.mean(x, axis=-1, keepdims=True)
    std = jnp.std(x, axis=-1, keepdims=True, ddof=1)
    normed_ref = a_2 * (x - mean) / (std + 1e-6) + b_2
    ref = x + (normed_ref @ w + bias)

    # --- eval mode (dropout = identity): generic two-kernel path ---
    out_eval = sublayer_connection_forward(
        x, a_2, b_2, sublayer_fn, dropout_rate=dropout_rate, training=False)
    out_eval = jax.block_until_ready(out_eval)
    assert jnp.allclose(out_eval, ref, atol=1e-4, rtol=1e-4), "generic eval mismatch"

    # --- eval mode: fused LN + Linear + residual kernel ---
    out_eval_fused = sublayer_connection_linear_forward(
        x, a_2, b_2, w, bias, dropout_rate=dropout_rate, training=False)
    out_eval_fused = jax.block_until_ready(out_eval_fused)
    assert jnp.allclose(out_eval_fused, ref, atol=2e-3, rtol=2e-3), "fused eval mismatch"

    # --- training mode (inverted dropout via streamed uint32 bits), both paths ---
    out_train = sublayer_connection_forward(
        x, a_2, b_2, sublayer_fn, dropout_rate=dropout_rate, training=True, key=kdrop)
    out_train = jax.block_until_ready(out_train)
    assert out_train.shape == (B, S, H)
    assert bool(jnp.all(jnp.isfinite(out_train)))

    out_train_fused = sublayer_connection_linear_forward(
        x, a_2, b_2, w, bias, dropout_rate=dropout_rate, training=True, key=kdrop)
    out_train_fused = jax.block_until_ready(out_train_fused)
    assert out_train_fused.shape == (B, S, H)
    assert bool(jnp.all(jnp.isfinite(out_train_fused)))

    print("KERNEL_OK")
</pallas_src>

<mosaic_0001>
module attributes {stable_mosaic.version = 11 : i64} {
  func.func @_layernorm_kernel(%arg0: i32, %arg1: memref<16x32xf32, #tpu.memory_space<vmem>>, %arg2: memref<1x32xf32, #tpu.memory_space<vmem>>, %arg3: memref<1x32xf32, #tpu.memory_space<vmem>>, %arg4: memref<16x32xf32, #tpu.memory_space<vmem>>) attributes {dimension_semantics = [#tpu.dimension_semantics<parallel>], iteration_bounds = array<i64: 1>, scalar_prefetch = 0 : i64, scratch_operands = 0 : i64, tpu.core_type = #tpu.core_type<tc>, window_params = [{transform_indices = @transform_0, window_bounds = array<i64: 16, 32>}, {pipeline_mode = #tpu.pipeline_mode<synchronous>, transform_indices = @transform_1, window_bounds = array<i64: 1, 32>}, {pipeline_mode = #tpu.pipeline_mode<synchronous>, transform_indices = @transform_2, window_bounds = array<i64: 1, 32>}, {transform_indices = @transform_3, window_bounds = array<i64: 16, 32>}]} {
    %c0 = arith.constant 0 : index
    %c0_0 = arith.constant 0 : index
    %0 = vector.load %arg1[%c0, %c0_0] : memref<16x32xf32, #tpu.memory_space<vmem>>, vector<16x32xf32>
    %cst = arith.constant dense<0.000000e+00> : vector<16xf32>
    %1 = vector.multi_reduction <add>, %0, %cst [1] : vector<16x32xf32> to vector<16xf32>
    %2 = vector.shape_cast %1 : vector<16xf32> to vector<16x1xf32>
    %cst_1 = arith.constant 3.200000e+01 : f32
    %3 = vector.broadcast %cst_1 : f32 to vector<16x1xf32>
    %4 = arith.divf %2, %3 : vector<16x1xf32>
    %5 = vector.broadcast %4 : vector<16x1xf32> to vector<16x32xf32>
    %6 = arith.subf %0, %5 : vector<16x32xf32>
    %7 = arith.mulf %6, %6 : vector<16x32xf32>
    %cst_2 = arith.constant dense<0.000000e+00> : vector<16xf32>
    %8 = vector.multi_reduction <add>, %7, %cst_2 [1] : vector<16x32xf32> to vector<16xf32>
    %9 = vector.shape_cast %8 : vector<16xf32> to vector<16x1xf32>
    %cst_3 = arith.constant 0.0322580636 : f32
    %10 = vector.broadcast %cst_3 : f32 to vector<16x1xf32>
    %11 = arith.mulf %9, %10 : vector<16x1xf32>
    %12 = math.sqrt %11 : vector<16x1xf32>
    %cst_4 = arith.constant 9.99999997E-7 : f32
    %13 = vector.broadcast %cst_4 : f32 to vector<16x1xf32>
    %14 = arith.addf %12, %13 : vector<16x1xf32>
    %cst_5 = arith.constant 1.000000e+00 : f32
    %15 = vector.broadcast %cst_5 : f32 to vector<16x1xf32>
    %16 = arith.divf %15, %14 : vector<16x1xf32>
    %c0_6 = arith.constant 0 : index
    %c0_7 = arith.constant 0 : index
    %17 = vector.load %arg2[%c0_6, %c0_7] : memref<1x32xf32, #tpu.memory_space<vmem>>, vector<1x32xf32>
    %18 = vector.broadcast %16 : vector<16x1xf32> to vector<16x32xf32>
    %19 = arith.mulf %6, %18 : vector<16x32xf32>
    %20 = vector.broadcast %17 : vector<1x32xf32> to vector<16x32xf32>
    %21 = arith.mulf %20, %19 : vector<16x32xf32>
    %c0_8 = arith.constant 0 : index
    %c0_9 = arith.constant 0 : index
    %22 = vector.load %arg3[%c0_8, %c0_9] : memref<1x32xf32, #tpu.memory_space<vmem>>, vector<1x32xf32>
    %23 = vector.broadcast %22 : vector<1x32xf32> to vector<16x32xf32>
    %24 = arith.addf %21, %23 : vector<16x32xf32>
    %c0_10 = arith.constant 0 : index
    %c0_11 = arith.constant 0 : index
    %25 = vector.load %arg4[%c0_10, %c0_11] : memref<16x32xf32, #tpu.memory_space<vmem>>, vector<16x32xf32>
    tpu.vector_store %arg4[%c0_10, %c0_11], %24 {strides = array<i32>} : memref<16x32xf32, #tpu.memory_space<vmem>>, vector<16x32xf32>,
    return
  }
  func.func @transform_0(%arg0: i32) -> (i32, i32) {
    %c0_i32 = arith.constant 0 : i32
    %c0_i32_0 = arith.constant 0 : i32
    return %arg0, %c0_i32 : i32, i32
  }
  func.func @transform_1(%arg0: i32) -> (i32, i32) {
    %c0_i32 = arith.constant 0 : i32
    %c0_i32_0 = arith.constant 0 : i32
    %c0_i32_1 = arith.constant 0 : i32
    return %c0_i32, %c0_i32_0 : i32, i32
  }
  func.func @transform_2(%arg0: i32) -> (i32, i32) {
    %c0_i32 = arith.constant 0 : i32
    %c0_i32_0 = arith.constant 0 : i32
    %c0_i32_1 = arith.constant 0 : i32
    return %c0_i32, %c0_i32_0 : i32, i32
  }
  func.func @transform_3(%arg0: i32) -> (i32, i32) {
    %c0_i32 = arith.constant 0 : i32
    %c0_i32_0 = arith.constant 0 : i32
    return %arg0, %c0_i32 : i32, i32
  }
}

</mosaic_0001>

<llo_original>
// kernel: tpu_custom_call.1
$region0: #{tpu_custom_call.1}
  #allocation0 [shape = 'u32[]', space=smem, size = 0x4, offset = 0x4, fixed_abs, tag = 'smem constant byte address 0x4 - core index']
  #allocation1 [shape = 'u32[144,128]{1,0:T(1,128)}', space=vmem, size = 0x12000, scoped, tag = 'internal scratch']
  %s0 = inlined_call_operand.hbm [shape: f32[16,32], index: 0, kind: input, shape index: {}]
  %s1 = inlined_call_operand.vmem [shape: f32[1,32], index: 1, kind: input, shape index: {}]
  %s2 = inlined_call_operand.vmem [shape: f32[1,32], index: 2, kind: input, shape index: {}]
  %s3 = inlined_call_operand.hbm [shape: f32[16,32], index: 3, kind: output, shape index: {}]
  %s4 = sld [smem:[#allocation0]]
  $region26: #{tpu_custom_call.1} parent=0
    _
  %s6 = ssub.s32 1, %s4
  %s7 = scalar_select 0, %s6, %s4
  $region1: #{tpu_custom_call.1} parent=0
    #allocation2 [shape = 'u8[8192]{0}', space=vmem, size = 0x2000, scoped, tag = 'input window, operand 0, single buffered']
    #allocation3 [shape = 's32[1]{0}', space=sflag, size = 0x4, scoped, tag = 'scoped memory for tpu_custom_call.1']
    #allocation4 [shape = 's32[1]{0}', space=sflag, size = 0x4, scoped, tag = 'scoped memory for tpu_custom_call.1']
    #allocation5 [shape = 'u8[8192]{0}', space=vmem, size = 0x2000, scoped, tag = 'output window, operand 0, single buffered']
    %8 = vsyncpa [#allocation3], 0
    %9 = vsyncpa [#allocation4], 0
    // Predicated region
    $region2: #{tpu_custom_call.1} parent=1 // pred_check
      _
    $region3: #{tpu_custom_call.1} parent=1 // pred_check_branch
      %11 = sbr.rel (0) target = $region5
    $region4: #{tpu_custom_call.1} parent=1 // pred_region
      %s13 = ssub.s32 256, 256
      %14 = vsyncadd [#allocation3], %s13
      %s15 = sshll.u32 [#allocation2], 4
      %s16 = int_to_ptr.vmem [resolvable:$true] %s15
      %21 = dma.hbm_to_vmem [thread:$0]  %s0, 256, %s16, [#allocation3], 128, 128, 8
    $region5: #{tpu_custom_call.1} parent=1 // pred_fallthru
      _
    // Predicated region
    $region6: #{tpu_custom_call.1} parent=1 // pred_check
      _
    $region7: #{tpu_custom_call.1} parent=1 // pred_check_branch
      %23 = sbr.rel (0) target = $region9
    $region8: #{tpu_custom_call.1} parent=1 // pred_region
      _
    $region9: #{tpu_custom_call.1} parent=1 // pred_fallthru
      _
    // Predicated region
    $region10: #{tpu_custom_call.1} parent=1 // pred_check
      _
    $region11: #{tpu_custom_call.1} parent=1 // pred_check_branch
      %25 = sbr.rel (0) target = $region13
    $region12: #{tpu_custom_call.1} parent=1 // pred_region
      _
    $region13: #{tpu_custom_call.1} parent=1 // pred_fallthru
      _
    // Predicated region
    $region14: #{tpu_custom_call.1} parent=1 // pred_check
      _
    $region15: #{tpu_custom_call.1} parent=1 // pred_check_branch
      %27 = sbr.rel (0) target = $region17
    $region16: #{tpu_custom_call.1} parent=1 // pred_region
      %28 = dma.done [#allocation3], 256
    $region17: #{tpu_custom_call.1} parent=1 // pred_fallthru
      _
    %v29 = vld [vmem:[#allocation2] sm:$0xff]
    %v30 = vld [vmem:[#allocation2 + $0x8] sm:$0xff]
    %vm31 = vcmask 261120
    %v32 = vsel %vm31, %v29, 0.0
    %33 = vadd.xlane.f32.xlu0 %v32
    %v34 = vpop.xlane.xlu0 %33
    %v35 = vsel %vm31, %v30, 0.0
    %36 = vadd.xlane.f32.xlu0 %v35
    %v37 = vpop.xlane.xlu0 %36
    %v38 = vrcp.pop 32.0
    %v39 = vmul.f32 %v34, %v38
    %v40 = vmul.f32 %v37, %v38
    %v41 = vsub.f32 %v29, %v39
    %v42 = vsub.f32 %v30, %v40
    %v43 = vmul.f32 %v41, %v41
    %v44 = vmul.f32 %v42, %v42
    %v45 = vsel %vm31, %v43, 0.0
    %46 = vadd.xlane.f32.xlu0 %v45
    %v47 = vpop.xlane.xlu0 %46
    %v48 = vsel %vm31, %v44, 0.0
    %49 = vadd.xlane.f32.xlu0 %v48
    %v50 = vpop.xlane.xlu0 %49
    %v51 = vmul.f32 %v47, 0.032258064
    %v52 = vmul.f32 %v50, 0.032258064
    %v53 = vrsqrt.pop %v51
    %v54 = vmul.f32 %v51, %v53
    %vm55 = vcmp.eq.f32.partialorder %v51, inf
    %v56 = vsel %vm55, %v51, %v54
    %vm57 = vcmp.eq.f32.partialorder %v51, 0.0
    %v58 = vand.u32 %v51, 2147483648
    %v59 = vsel %vm57, %v58, %v56
    %v60 = vrsqrt.pop %v52
    %v61 = vmul.f32 %v52, %v60
    %vm62 = vcmp.eq.f32.partialorder %v52, inf
    %v63 = vsel %vm62, %v52, %v61
    %vm64 = vcmp.eq.f32.partialorder %v52, 0.0
    %v65 = vand.u32 %v52, 2147483648
    %v66 = vsel %vm64, %v65, %v63
    %v67 = vadd.f32 %v59, 1e-06
    %v68 = vadd.f32 %v66, 1e-06
    %v69 = vrcp.pop %v67
    %v70 = vmul.f32 1.0, %v69
    %v71 = vrcp.pop %v68
    %v72 = vmul.f32 1.0, %v71
    %v73 = vld [vmem:[%s1] sm:$0x1]
    %v74 = vmul.f32 %v41, %v70
    %v75 = vmul.f32 %v42, %v72
    %v77 = vlaneseq
    %v78 = vshrl.u32 %v77, 7
    %v79 = vsub.s32 0, %v78
    %v80 = vrot.slane %v73, %v79
    %v82 = vmul.f32 %v80, %v74
    %v83 = vmul.f32 %v80, %v75
    %v84 = vld [vmem:[%s2] sm:$0x1]
    %v86 = vlaneseq
    %v87 = vshrl.u32 %v86, 7
    %v88 = vsub.s32 0, %v87
    %v89 = vrot.slane %v84, %v88
    %v91 = vadd.f32 %v82, %v89
    %v92 = vadd.f32 %v83, %v89
    %93 = vst.msk [vmem:[#allocation5] sm:$0xff] %vm31, %v91
    %94 = vst.msk [vmem:[#allocation5 + $0x8] sm:$0xff] %vm31, %v92
    // Predicated region
    $region18: #{tpu_custom_call.1} parent=1 // pred_check
      _
    $region19: #{tpu_custom_call.1} parent=1 // pred_check_branch
      %96 = sbr.rel (0) target = $region21
    $region20: #{tpu_custom_call.1} parent=1 // pred_region
      %s98 = ssub.s32 256, 256
      %99 = vsyncadd [#allocation4], %s98
      %s100 = sshll.u32 [#allocation5], 4
      %s101 = int_to_ptr.vmem [resolvable:$true] %s100
      %106 = dma.vmem_to_hbm [thread:$0]  %s101, 256, %s3, [#allocation4], 128, 128, 8
    $region21: #{tpu_custom_call.1} parent=1 // pred_fallthru
      _
    // Predicated region
    $region22: #{tpu_custom_call.1} parent=1 // pred_check
      _
    $region23: #{tpu_custom_call.1} parent=1 // pred_check_branch
      %108 = sbr.rel (0) target = $region25
    $region24: #{tpu_custom_call.1} parent=1 // pred_region
      %109 = dma.done [#allocation4], 256
    $region25: #{tpu_custom_call.1} parent=1 // pred_fallthru
      _
    %110 = vsyncpa [#allocation3], 1
    %111 = vsyncpa [#allocation4], 1

</llo_original>
